<compile_context>
chip_gen: v5e
topology: v5e:2x2
jax: 0.10.0
libtpu: 0.0.40
codegen_flags: <defaults>
</compile_context>

<pallas_src>
import functools

import jax
import jax.numpy as jnp
from jax import lax
from jax.experimental import pallas as pl
from jax.experimental.pallas import tpu as pltpu


# ----------------------------- configuration ------------------------------ #
class PhysicsLossConfig:
    dx = 1.0
    dy = 1.0
    dt = 0.1
    gravity = 9.81
    manning_coef = 0.035
    physics_weight = 0.1          # initial_physics_weight
    adaptive_weighting = True
    min_physics_weight = 0.01
    max_physics_weight = 1.0
    adaptation_rate = 0.05
    continuity_weight = 1.0
    x_momentum_weight = 0.5
    y_momentum_weight = 0.5


# ------------------------------- the kernel ------------------------------- #
def _physics_loss_kernel(pred_ref, inp_ref, targ_ref, *rest,
                         dx, dy, dt, g, n_manning, has_elevation):
    if has_elevation:
        z_ref, out_ref = rest
    else:
        (out_ref,) = rest

    f32 = jnp.float32
    # Upcast after load: operands may be bf16 (halves HBM traffic on v5e).
    p = pred_ref[...].astype(f32)      # (TB, C, H, W)
    t = targ_ref[...].astype(f32)      # (TB, C, H, W)
    q0 = inp_ref[...].astype(f32)      # (TB, 3, H, W)  -- only 3 channels DMA'd

    # ---- data term: sum((pred - targ)^2) over this batch block ----
    diff = p - t
    s_data = jnp.sum(diff * diff)

    h_pred, qx_pred, qy_pred = p[:, 0], p[:, 1], p[:, 2]      # (TB, H, W)
    h_prev, qx_prev, qy_prev = q0[:, 0], q0[:, 1], q0[:, 2]

    TB, H, W = h_pred.shape
    R = TB * H                      # flattened (batch*row) extent

    # Boundary masks fused with the central-difference scale (saves one vmul
    # per ddx/ddy call); hoisted once per grid step, broadcast over TB.
    col = lax.broadcasted_iota(jnp.int32, (H, W), 1)
    row = lax.broadcasted_iota(jnp.int32, (H, W), 0)
    sx = jnp.where((col >= 1) & (col <= W - 2),
                   f32(1.0 / (2.0 * dx)), f32(0.0))
    sy = jnp.where((row >= 1) & (row <= H - 2),
                   f32(1.0 / (2.0 * dy)), f32(0.0))
    inv_dt = 1.0 / dt

    def ddx(f):
        # (f[..., j+1] - f[..., j-1]) / (2*dx), zero on boundary columns.
        f2 = f.reshape(R, W)                              # free when H % 8 == 0
        d = pltpu.roll(f2, shift=W - 1, axis=1) - pltpu.roll(f2, shift=1, axis=1)
        return d.reshape(TB, H, W) * sx

    def ddy(f):
        # Rolling the flattened (TB*H, W) view wraps across image boundaries
        # only on rows that sy zeroes, so interior rows are exact.
        f2 = f.reshape(R, W)
        d = pltpu.roll(f2, shift=R - 1, axis=0) - pltpu.roll(f2, shift=1, axis=0)
        return d.reshape(TB, H, W) * sy

    # ---- continuity residual ----
    cont = (h_pred - h_prev) * inv_dt + ddx(qx_pred) + ddy(qy_pred)
    s_cont = jnp.sum(cont * cont)

    if has_elevation:
        z = z_ref[...].astype(f32)[:, 0]                  # (TB, H, W)
        eps = 1e-6

        inv_h = 1.0 / (h_pred + eps)     # single exact reciprocal, shared u/v
        # TODO(synk): pl.reciprocal(..., approx=True) trims EUP on v7x if the
        #             looser accuracy is acceptable for training.
        u = qx_pred * inv_h
        v = qy_pred * inv_h

        dqx_dt = (qx_pred - qx_prev) * inv_dt
        dqy_dt = (qy_pred - qy_prev) * inv_dt

        hu = h_pred * u
        flux_xy = hu * v
        dflux_xy_dx = ddx(flux_xy)
        dflux_xy_dy = ddy(flux_xy)

        gh = g * h_pred

        # Friction factor: g*n^2*|vel| * h^(-4/3).  exp(-(4/3)*log(max(h,
        # eps^0.75))) reproduces torch's "clamp h^(4/3) to eps" semantics
        # (including h <= 0 -> NaN -> eps) while removing the divide + select.
        vel_mag = jnp.sqrt(u * u + v * v)
        inv_h_pow = jnp.exp((-4.0 / 3.0)
                            * jnp.log(jnp.maximum(h_pred, f32(eps ** 0.75))))
        fric = (g * n_manning * n_manning) * vel_mag * inv_h_pow

        # Build/reduce x_res first, then y_res, to bound live (TB,H,W) temps.
        x_res = dqx_dt + ddx(hu * u) + dflux_xy_dy + gh * ddx(z) + u * fric
        s_xm = jnp.sum(x_res * x_res)
        y_res = (dqy_dt + dflux_xy_dx + ddy(h_pred * v * v)
                 + gh * ddy(z) + v * fric)
        s_ym = jnp.sum(y_res * y_res)
    else:
        s_xm = jnp.float32(0.0)
        s_ym = jnp.float32(0.0)

    # ---- emit one lane-dense (8,128) partial-sum tile per batch block ----
    lane = lax.broadcasted_iota(jnp.int32, (8, 128), 1)
    sub = lax.broadcasted_iota(jnp.int32, (8, 128), 0)
    r0 = sub == 0
    out_ref[...] = (jnp.where(r0 & (lane == 0), s_data, 0.0)
                    + jnp.where(r0 & (lane == 1), s_cont, 0.0)
                    + jnp.where(r0 & (lane == 2), s_xm, 0.0)
                    + jnp.where(r0 & (lane == 3), s_ym, 0.0))


# --------------------------- batch-block picker ---------------------------- #
def _pick_batch_block(B, per_elem_bytes, vmem_budget):
    """Largest batch block that (a) fits the VMEM budget, (b) is <= 32,
    (c) leaves >= 2 grid steps when B >= 2 (v7x megacore), (d) divides B."""
    cap = max(1, min(32, int(vmem_budget // max(per_elem_bytes, 1))))
    if B >= 2:
        cap = min(cap, (B + 1) // 2)
    cap = max(1, min(cap, B))
    tb = 1
    for d in range(1, cap + 1):
        if B % d == 0:
            tb = d
    # TODO(synk): for prime/awkward B, zero-pad the batch to a multiple of the
    #             cap (zero-padded elements contribute exactly 0 to every sum).
    return tb


# ------------------------------- the wrapper ------------------------------- #
def physics_loss_forward(predictions, inputs, targets, elevation=None,
                         cfg=PhysicsLossConfig, training=True,
                         physics_weight=None):
    """JAX/Pallas equivalent of PhysicsLossModule.forward (NCHW inputs).

    physics_weight: pass the previous step's weight to emulate the PyTorch
    module's persistent self.physics_weight; defaults to cfg.physics_weight.
    """
    B, C, H, W = predictions.shape
    assert C >= 3 and inputs.shape[1] >= 3
    has_elev = elevation is not None

    # ---- device-aware VMEM budget (~25% headroom; v7x has only 64 MiB) ----
    try:
        vmem_cap = int(getattr(pltpu.get_tpu_info(), "vmem_capacity_bytes",
                               64 * 1024 * 1024))
    except Exception:
        vmem_cap = 64 * 1024 * 1024
    vmem_budget = (vmem_cap * 3) // 4

    # double-buffered input tiles + ~20 live (H, W) f32 temporaries per element
    n_in_ch = 2 * C + 3 + (1 if has_elev else 0)
    per_elem_bytes = (2 * n_in_ch + 20) * H * W * 4

    tb = _pick_batch_block(B, per_elem_bytes, vmem_budget)
    grid = B // tb

    kernel = functools.partial(
        _physics_loss_kernel,
        dx=float(cfg.dx), dy=float(cfg.dy), dt=float(cfg.dt),
        g=float(cfg.gravity), n_manning=float(cfg.manning_coef),
        has_elevation=has_elev)

    pred_spec = pl.BlockSpec((tb, C, H, W), lambda b: (b, 0, 0, 0))
    inp_spec = pl.BlockSpec((tb, 3, H, W), lambda b: (b, 0, 0, 0))
    in_specs = [pred_spec, inp_spec, pred_spec]
    operands = [predictions, inputs, targets]
    if has_elev:
        in_specs.append(pl.BlockSpec((tb, 1, H, W), lambda b: (b, 0, 0, 0)))
        operands.append(elevation)

    n_field = B * H * W
    flops = int(3 * B * C * H * W + (100 if has_elev else 15) * n_field)
    transcendentals = int(4 * n_field) if has_elev else 0   # recip,sqrt,log,exp
    bytes_accessed = int(((2 * C + 3 + (1 if has_elev else 0)) * B * H * W
                          + grid * 8 * 128) * 4)

    partials = pl.pallas_call(
        kernel,
        out_shape=jax.ShapeDtypeStruct((grid, 8, 128), jnp.float32),
        grid=(grid,),
        in_specs=in_specs,
        out_specs=pl.BlockSpec((None, 8, 128), lambda b: (b, 0, 0)),
        compiler_params=pltpu.CompilerParams(
            dimension_semantics=("parallel",),
            vmem_limit_bytes=int(vmem_budget)),
        cost_estimate=pl.CostEstimate(
            flops=flops, transcendentals=transcendentals,
            bytes_accessed=bytes_accessed),
    )(*operands)

    # finish the tiny (grid, 4) reduction in plain JAX
    sums = jnp.sum(partials[:, 0, 0:4], axis=0)

    n_all = float(B * C * H * W)
    n_f = float(B * H * W)

    data_loss = sums[0] / n_all
    continuity_loss = (sums[1] / n_f) * cfg.continuity_weight

    losses = {'data': data_loss,
              'physics_components': {'continuity': continuity_loss}}
    physics_loss = continuity_loss

    if has_elev:
        x_momentum_loss = (sums[2] / n_f) * cfg.x_momentum_weight
        y_momentum_loss = (sums[3] / n_f) * cfg.y_momentum_weight
        losses['physics_components']['x_momentum'] = x_momentum_loss
        losses['physics_components']['y_momentum'] = y_momentum_loss
        physics_loss = continuity_loss + x_momentum_loss + y_momentum_loss

    losses['physics'] = physics_loss

    if physics_weight is None:
        physics_weight = cfg.physics_weight
    if cfg.adaptive_weighting and training:
        loss_ratio = data_loss / (physics_loss + 1e-8)
        up = min(physics_weight * (1.0 + cfg.adaptation_rate), cfg.max_physics_weight)
        down = max(physics_weight * (1.0 - cfg.adaptation_rate), cfg.min_physics_weight)
        physics_weight = jnp.where(
            loss_ratio > 10.0, up,
            jnp.where(loss_ratio < 0.1, down, physics_weight))

    weighted_physics_loss = physics_weight * physics_loss
    total_loss = data_loss + weighted_physics_loss

    losses['physics_weight'] = physics_weight
    losses['weighted_physics'] = weighted_physics_loss
    losses['total'] = total_loss
    return losses


# -------------------------- pure-JAX reference ----------------------------- #
def _ref_losses(predictions, inputs, targets, elevation, cfg=PhysicsLossConfig):
    dx, dy, dt, g, n = cfg.dx, cfg.dy, cfg.dt, cfg.gravity, cfg.manning_coef
    h_p, qx_p, qy_p = predictions[:, 0:1], predictions[:, 1:2], predictions[:, 2:3]
    h_0, qx_0, qy_0 = inputs[:, 0:1], inputs[:, 1:2], inputs[:, 2:3]

    def ddx(q):
        d = jnp.zeros_like(q)
        return d.at[:, :, :, 1:-1].set((q[:, :, :, 2:] - q[:, :, :, :-2]) / (2 * dx))

    def ddy(q):
        d = jnp.zeros_like(q)
        return d.at[:, :, 1:-1, :].set((q[:, :, 2:, :] - q[:, :, :-2, :]) / (2 * dy))

    data = jnp.mean((predictions - targets) ** 2)
    cont = (h_p - h_0) / dt + ddx(qx_p) + ddy(qy_p)
    cont_l = jnp.mean(cont ** 2) * cfg.continuity_weight
    physics = cont_l

    if elevation is not None:
        eps = 1e-6
        u = qx_p / (h_p + eps)
        v = qy_p / (h_p + eps)
        vel = jnp.sqrt(u ** 2 + v ** 2)
        h_pow = jnp.where(h_p ** (4 / 3) > eps, h_p ** (4 / 3), eps)
        xr = ((qx_p - qx_0) / dt + ddx(h_p * u * u) + ddy(h_p * u * v)
              + g * h_p * ddx(elevation) + g * n ** 2 * u * vel / h_pow)
        yr = ((qy_p - qy_0) / dt + ddx(h_p * u * v) + ddy(h_p * v * v)
              + g * h_p * ddy(elevation) + g * n ** 2 * v * vel / h_pow)
        xm = jnp.mean(xr ** 2) * cfg.x_momentum_weight
        ym = jnp.mean(yr ** 2) * cfg.y_momentum_weight
        physics = cont_l + xm + ym
    return data, cont_l, physics


if __name__ == "__main__":
    key = jax.random.PRNGKey(0)
    k1, k2, k3, k4 = jax.random.split(key, 4)
    B, C, H, W = 2, 3, 16, 16

    # positive depths so h**(4/3) is well defined (as the physics assumes)
    predictions = jax.random.uniform(k1, (B, C, H, W), jnp.float32, 0.5, 1.5)
    inputs = jax.random.uniform(k2, (B, C, H, W), jnp.float32, 0.5, 1.5)
    targets = jax.random.uniform(k3, (B, C, H, W), jnp.float32, 0.5, 1.5)
    elevation = jax.random.uniform(k4, (B, 1, H, W), jnp.float32, 0.0, 0.5)

    # --- with elevation (full physics) ---
    losses = physics_loss_forward(predictions, inputs, targets, elevation)
    jax.block_until_ready(losses['total'])
    ref_data, ref_cont, ref_phys = _ref_losses(predictions, inputs, targets, elevation)
    assert jnp.allclose(losses['data'], ref_data, rtol=2e-3, atol=1e-4)
    assert jnp.allclose(losses['physics_components']['continuity'], ref_cont,
                        rtol=2e-3, atol=1e-4)
    assert jnp.allclose(losses['physics'], ref_phys, rtol=2e-3, atol=1e-4)

    # --- without elevation (momentum work statically skipped in the kernel) ---
    losses_ne = physics_loss_forward(predictions, inputs, targets, None)
    jax.block_until_ready(losses_ne['total'])
    ref_data2, ref_cont2, ref_phys2 = _ref_losses(predictions, inputs, targets, None)
    assert jnp.allclose(losses_ne['data'], ref_data2, rtol=2e-3, atol=1e-4)
    assert jnp.allclose(losses_ne['physics'], ref_phys2, rtol=2e-3, atol=1e-4)

    print("KERNEL_OK")
</pallas_src>

<mosaic_0001>
module attributes {stable_mosaic.version = 11 : i64} {
  func.func @_physics_loss_kernel(%arg0: i32, %arg1: memref<1x3x16x16xf32, #tpu.memory_space<vmem>>, %arg2: memref<1x3x16x16xf32, #tpu.memory_space<vmem>>, %arg3: memref<1x3x16x16xf32, #tpu.memory_space<vmem>>, %arg4: memref<1x1x16x16xf32, #tpu.memory_space<vmem>>, %arg5: memref<1x8x128xf32, #tpu.memory_space<vmem>>) attributes {dimension_semantics = [#tpu.dimension_semantics<parallel>], iteration_bounds = array<i64: 2>, scalar_prefetch = 0 : i64, scratch_operands = 0 : i64, tpu.core_type = #tpu.core_type<tc>, window_params = [{transform_indices = @transform_0, window_bounds = array<i64: 1, 3, 16, 16>}, {transform_indices = @transform_1, window_bounds = array<i64: 1, 3, 16, 16>}, {transform_indices = @transform_2, window_bounds = array<i64: 1, 3, 16, 16>}, {transform_indices = @transform_3, window_bounds = array<i64: 1, 1, 16, 16>}, {transform_indices = @transform_4, window_bounds = array<i64: 1, 8, 128>}]} {
    %c0 = arith.constant 0 : index
    %c0_0 = arith.constant 0 : index
    %c0_1 = arith.constant 0 : index
    %c0_2 = arith.constant 0 : index
    %0 = vector.load %arg1[%c0, %c0_0, %c0_1, %c0_2] : memref<1x3x16x16xf32, #tpu.memory_space<vmem>>, vector<1x3x16x16xf32>
    %c0_3 = arith.constant 0 : index
    %c0_4 = arith.constant 0 : index
    %c0_5 = arith.constant 0 : index
    %c0_6 = arith.constant 0 : index
    %1 = vector.load %arg3[%c0_3, %c0_4, %c0_5, %c0_6] : memref<1x3x16x16xf32, #tpu.memory_space<vmem>>, vector<1x3x16x16xf32>
    %c0_7 = arith.constant 0 : index
    %c0_8 = arith.constant 0 : index
    %c0_9 = arith.constant 0 : index
    %c0_10 = arith.constant 0 : index
    %2 = vector.load %arg2[%c0_7, %c0_8, %c0_9, %c0_10] : memref<1x3x16x16xf32, #tpu.memory_space<vmem>>, vector<1x3x16x16xf32>
    %3 = arith.subf %0, %1 : vector<1x3x16x16xf32>
    %4 = arith.mulf %3, %3 : vector<1x3x16x16xf32>
    %5 = vector.shape_cast %4 : vector<1x3x16x16xf32> to vector<1x1x3x16x16xf32>
    %cst = arith.constant dense<0.000000e+00> : vector<1xf32>
    %6 = vector.multi_reduction <add>, %5, %cst [1, 2, 3, 4] : vector<1x1x3x16x16xf32> to vector<1xf32>
    %7 = vector.shape_cast %6 : vector<1xf32> to vector<1x1x1x1x1xf32>
    %8 = vector.extract %7[0, 0, 0, 0, 0] : f32 from vector<1x1x1x1x1xf32>
    %9 = vector.extract_strided_slice %0 {offsets = [0, 0, 0, 0], sizes = [1, 1, 16, 16], strides = [1, 1, 1, 1]} : vector<1x3x16x16xf32> to vector<1x1x16x16xf32>
    %10 = vector.shape_cast %9 : vector<1x1x16x16xf32> to vector<1x16x16xf32>
    %11 = vector.extract_strided_slice %0 {offsets = [0, 1, 0, 0], sizes = [1, 1, 16, 16], strides = [1, 1, 1, 1]} : vector<1x3x16x16xf32> to vector<1x1x16x16xf32>
    %12 = vector.shape_cast %11 : vector<1x1x16x16xf32> to vector<1x16x16xf32>
    %13 = vector.extract_strided_slice %0 {offsets = [0, 2, 0, 0], sizes = [1, 1, 16, 16], strides = [1, 1, 1, 1]} : vector<1x3x16x16xf32> to vector<1x1x16x16xf32>
    %14 = vector.shape_cast %13 : vector<1x1x16x16xf32> to vector<1x16x16xf32>
    %15 = vector.extract_strided_slice %2 {offsets = [0, 0, 0, 0], sizes = [1, 1, 16, 16], strides = [1, 1, 1, 1]} : vector<1x3x16x16xf32> to vector<1x1x16x16xf32>
    %16 = vector.shape_cast %15 : vector<1x1x16x16xf32> to vector<1x16x16xf32>
    %17 = vector.extract_strided_slice %2 {offsets = [0, 1, 0, 0], sizes = [1, 1, 16, 16], strides = [1, 1, 1, 1]} : vector<1x3x16x16xf32> to vector<1x1x16x16xf32>
    %18 = vector.shape_cast %17 : vector<1x1x16x16xf32> to vector<1x16x16xf32>
    %19 = vector.extract_strided_slice %2 {offsets = [0, 2, 0, 0], sizes = [1, 1, 16, 16], strides = [1, 1, 1, 1]} : vector<1x3x16x16xf32> to vector<1x1x16x16xf32>
    %20 = vector.shape_cast %19 : vector<1x1x16x16xf32> to vector<1x16x16xf32>
    %21 = tpu.iota {dimensions = array<i32: 1>} : vector<16x16xi32>
    %22 = tpu.iota {dimensions = array<i32: 0>} : vector<16x16xi32>
    %c1_i32 = arith.constant 1 : i32
    %23 = vector.broadcast %c1_i32 : i32 to vector<16x16xi32>
    %24 = arith.cmpi sge, %21, %23 : vector<16x16xi32>
    %c14_i32 = arith.constant 14 : i32
    %25 = vector.broadcast %c14_i32 : i32 to vector<16x16xi32>
    %26 = arith.cmpi sle, %21, %25 : vector<16x16xi32>
    %27 = arith.andi %24, %26 : vector<16x16xi1>
    %cst_11 = arith.constant 5.000000e-01 : f32
    %cst_12 = arith.constant 0.000000e+00 : f32
    %28 = vector.broadcast %cst_11 : f32 to vector<16x16xf32>
    %29 = vector.broadcast %cst_12 : f32 to vector<16x16xf32>
    %30 = arith.select %27, %28, %29 : vector<16x16xi1>, vector<16x16xf32>
    %c1_i32_13 = arith.constant 1 : i32
    %31 = vector.broadcast %c1_i32_13 : i32 to vector<16x16xi32>
    %32 = arith.cmpi sge, %22, %31 : vector<16x16xi32>
    %c14_i32_14 = arith.constant 14 : i32
    %33 = vector.broadcast %c14_i32_14 : i32 to vector<16x16xi32>
    %34 = arith.cmpi sle, %22, %33 : vector<16x16xi32>
    %35 = arith.andi %32, %34 : vector<16x16xi1>
    %cst_15 = arith.constant 5.000000e-01 : f32
    %cst_16 = arith.constant 0.000000e+00 : f32
    %36 = vector.broadcast %cst_15 : f32 to vector<16x16xf32>
    %37 = vector.broadcast %cst_16 : f32 to vector<16x16xf32>
    %38 = arith.select %35, %36, %37 : vector<16x16xi1>, vector<16x16xf32>
    %39 = arith.subf %10, %16 : vector<1x16x16xf32>
    %cst_17 = arith.constant 1.000000e+01 : f32
    %40 = vector.broadcast %cst_17 : f32 to vector<1x16x16xf32>
    %41 = arith.mulf %39, %40 : vector<1x16x16xf32>
    %42 = vector.shape_cast %12 : vector<1x16x16xf32> to vector<16x16xf32>
    %c15_i32 = arith.constant 15 : i32
    %43 = tpu.dynamic_rotate %42 by %c15_i32 dim 1 : vector<16x16xf32>, i32 -> vector<16x16xf32>
    %c1_i32_18 = arith.constant 1 : i32
    %44 = tpu.dynamic_rotate %42 by %c1_i32_18 dim 1 : vector<16x16xf32>, i32 -> vector<16x16xf32>
    %45 = arith.subf %43, %44 : vector<16x16xf32>
    %46 = vector.shape_cast %45 : vector<16x16xf32> to vector<1x16x16xf32>
    %47 = vector.shape_cast %30 : vector<16x16xf32> to vector<1x16x16xf32>
    %48 = arith.mulf %46, %47 : vector<1x16x16xf32>
    %49 = arith.addf %41, %48 : vector<1x16x16xf32>
    %50 = vector.shape_cast %14 : vector<1x16x16xf32> to vector<16x16xf32>
    %c15_i32_19 = arith.constant 15 : i32
    %51 = tpu.dynamic_rotate %50 by %c15_i32_19 dim 0 : vector<16x16xf32>, i32 -> vector<16x16xf32>
    %c1_i32_20 = arith.constant 1 : i32
    %52 = tpu.dynamic_rotate %50 by %c1_i32_20 dim 0 : vector<16x16xf32>, i32 -> vector<16x16xf32>
    %53 = arith.subf %51, %52 : vector<16x16xf32>
    %54 = vector.shape_cast %53 : vector<16x16xf32> to vector<1x16x16xf32>
    %55 = vector.shape_cast %38 : vector<16x16xf32> to vector<1x16x16xf32>
    %56 = arith.mulf %54, %55 : vector<1x16x16xf32>
    %57 = arith.addf %49, %56 : vector<1x16x16xf32>
    %58 = arith.mulf %57, %57 : vector<1x16x16xf32>
    %59 = vector.shape_cast %58 : vector<1x16x16xf32> to vector<1x1x16x16xf32>
    %cst_21 = arith.constant dense<0.000000e+00> : vector<1xf32>
    %60 = vector.multi_reduction <add>, %59, %cst_21 [1, 2, 3] : vector<1x1x16x16xf32> to vector<1xf32>
    %61 = vector.shape_cast %60 : vector<1xf32> to vector<1x1x1x1xf32>
    %62 = vector.extract %61[0, 0, 0, 0] : f32 from vector<1x1x1x1xf32>
    %c0_22 = arith.constant 0 : index
    %c0_23 = arith.constant 0 : index
    %c0_24 = arith.constant 0 : index
    %c0_25 = arith.constant 0 : index
    %63 = vector.load %arg4[%c0_22, %c0_23, %c0_24, %c0_25] : memref<1x1x16x16xf32, #tpu.memory_space<vmem>>, vector<1x1x16x16xf32>
    %64 = vector.shape_cast %63 : vector<1x1x16x16xf32> to vector<1x16x16xf32>
    %cst_26 = arith.constant 9.99999997E-7 : f32
    %65 = vector.broadcast %cst_26 : f32 to vector<1x16x16xf32>
    %66 = arith.addf %10, %65 : vector<1x16x16xf32>
    %cst_27 = arith.constant 1.000000e+00 : f32
    %67 = vector.broadcast %cst_27 : f32 to vector<1x16x16xf32>
    %68 = arith.divf %67, %66 : vector<1x16x16xf32>
    %69 = arith.mulf %12, %68 : vector<1x16x16xf32>
    %70 = arith.mulf %14, %68 : vector<1x16x16xf32>
    %71 = arith.subf %12, %18 : vector<1x16x16xf32>
    %cst_28 = arith.constant 1.000000e+01 : f32
    %72 = vector.broadcast %cst_28 : f32 to vector<1x16x16xf32>
    %73 = arith.mulf %71, %72 : vector<1x16x16xf32>
    %74 = arith.subf %14, %20 : vector<1x16x16xf32>
    %cst_29 = arith.constant 1.000000e+01 : f32
    %75 = vector.broadcast %cst_29 : f32 to vector<1x16x16xf32>
    %76 = arith.mulf %74, %75 : vector<1x16x16xf32>
    %77 = arith.mulf %10, %69 : vector<1x16x16xf32>
    %78 = arith.mulf %77, %70 : vector<1x16x16xf32>
    %79 = vector.shape_cast %78 : vector<1x16x16xf32> to vector<16x16xf32>
    %c15_i32_30 = arith.constant 15 : i32
    %80 = tpu.dynamic_rotate %79 by %c15_i32_30 dim 1 : vector<16x16xf32>, i32 -> vector<16x16xf32>
    %c1_i32_31 = arith.constant 1 : i32
    %81 = tpu.dynamic_rotate %79 by %c1_i32_31 dim 1 : vector<16x16xf32>, i32 -> vector<16x16xf32>
    %82 = arith.subf %80, %81 : vector<16x16xf32>
    %83 = vector.shape_cast %82 : vector<16x16xf32> to vector<1x16x16xf32>
    %84 = vector.shape_cast %30 : vector<16x16xf32> to vector<1x16x16xf32>
    %85 = arith.mulf %83, %84 : vector<1x16x16xf32>
    %86 = vector.shape_cast %78 : vector<1x16x16xf32> to vector<16x16xf32>
    %c15_i32_32 = arith.constant 15 : i32
    %87 = tpu.dynamic_rotate %86 by %c15_i32_32 dim 0 : vector<16x16xf32>, i32 -> vector<16x16xf32>
    %c1_i32_33 = arith.constant 1 : i32
    %88 = tpu.dynamic_rotate %86 by %c1_i32_33 dim 0 : vector<16x16xf32>, i32 -> vector<16x16xf32>
    %89 = arith.subf %87, %88 : vector<16x16xf32>
    %90 = vector.shape_cast %89 : vector<16x16xf32> to vector<1x16x16xf32>
    %91 = vector.shape_cast %38 : vector<16x16xf32> to vector<1x16x16xf32>
    %92 = arith.mulf %90, %91 : vector<1x16x16xf32>
    %cst_34 = arith.constant 9.810000e+00 : f32
    %93 = vector.broadcast %cst_34 : f32 to vector<1x16x16xf32>
    %94 = arith.mulf %93, %10 : vector<1x16x16xf32>
    %95 = arith.mulf %69, %69 : vector<1x16x16xf32>
    %96 = arith.mulf %70, %70 : vector<1x16x16xf32>
    %97 = arith.addf %95, %96 : vector<1x16x16xf32>
    %98 = math.sqrt %97 : vector<1x16x16xf32>
    %cst_35 = arith.constant 3.16227779E-5 : f32
    %99 = vector.broadcast %cst_35 : f32 to vector<1x16x16xf32>
    %100 = arith.maximumf %10, %99 : vector<1x16x16xf32>
    %101 = math.log %100 : vector<1x16x16xf32>
    %cst_36 = arith.constant -1.33333337 : f32
    %102 = vector.broadcast %cst_36 : f32 to vector<1x16x16xf32>
    %103 = arith.mulf %102, %101 : vector<1x16x16xf32>
    %104 = math.exp %103 : vector<1x16x16xf32>
    %cst_37 = arith.constant 0.0120172501 : f32
    %105 = vector.broadcast %cst_37 : f32 to vector<1x16x16xf32>
    %106 = arith.mulf %105, %98 : vector<1x16x16xf32>
    %107 = arith.mulf %106, %104 : vector<1x16x16xf32>
    %108 = arith.mulf %77, %69 : vector<1x16x16xf32>
    %109 = vector.shape_cast %108 : vector<1x16x16xf32> to vector<16x16xf32>
    %c15_i32_38 = arith.constant 15 : i32
    %110 = tpu.dynamic_rotate %109 by %c15_i32_38 dim 1 : vector<16x16xf32>, i32 -> vector<16x16xf32>
    %c1_i32_39 = arith.constant 1 : i32
    %111 = tpu.dynamic_rotate %109 by %c1_i32_39 dim 1 : vector<16x16xf32>, i32 -> vector<16x16xf32>
    %112 = arith.subf %110, %111 : vector<16x16xf32>
    %113 = vector.shape_cast %112 : vector<16x16xf32> to vector<1x16x16xf32>
    %114 = vector.shape_cast %30 : vector<16x16xf32> to vector<1x16x16xf32>
    %115 = arith.mulf %113, %114 : vector<1x16x16xf32>
    %116 = arith.addf %73, %115 : vector<1x16x16xf32>
    %117 = arith.addf %116, %92 : vector<1x16x16xf32>
    %118 = vector.shape_cast %64 : vector<1x16x16xf32> to vector<16x16xf32>
    %c15_i32_40 = arith.constant 15 : i32
    %119 = tpu.dynamic_rotate %118 by %c15_i32_40 dim 1 : vector<16x16xf32>, i32 -> vector<16x16xf32>
    %c1_i32_41 = arith.constant 1 : i32
    %120 = tpu.dynamic_rotate %118 by %c1_i32_41 dim 1 : vector<16x16xf32>, i32 -> vector<16x16xf32>
    %121 = arith.subf %119, %120 : vector<16x16xf32>
    %122 = vector.shape_cast %121 : vector<16x16xf32> to vector<1x16x16xf32>
    %123 = vector.shape_cast %30 : vector<16x16xf32> to vector<1x16x16xf32>
    %124 = arith.mulf %122, %123 : vector<1x16x16xf32>
    %125 = arith.mulf %94, %124 : vector<1x16x16xf32>
    %126 = arith.addf %117, %125 : vector<1x16x16xf32>
    %127 = arith.mulf %69, %107 : vector<1x16x16xf32>
    %128 = arith.addf %126, %127 : vector<1x16x16xf32>
    %129 = arith.mulf %128, %128 : vector<1x16x16xf32>
    %130 = vector.shape_cast %129 : vector<1x16x16xf32> to vector<1x1x16x16xf32>
    %cst_42 = arith.constant dense<0.000000e+00> : vector<1xf32>
    %131 = vector.multi_reduction <add>, %130, %cst_42 [1, 2, 3] : vector<1x1x16x16xf32> to vector<1xf32>
    %132 = vector.shape_cast %131 : vector<1xf32> to vector<1x1x1x1xf32>
    %133 = vector.extract %132[0, 0, 0, 0] : f32 from vector<1x1x1x1xf32>
    %134 = arith.addf %76, %85 : vector<1x16x16xf32>
    %135 = arith.mulf %10, %70 : vector<1x16x16xf32>
    %136 = arith.mulf %135, %70 : vector<1x16x16xf32>
    %137 = vector.shape_cast %136 : vector<1x16x16xf32> to vector<16x16xf32>
    %c15_i32_43 = arith.constant 15 : i32
    %138 = tpu.dynamic_rotate %137 by %c15_i32_43 dim 0 : vector<16x16xf32>, i32 -> vector<16x16xf32>
    %c1_i32_44 = arith.constant 1 : i32
    %139 = tpu.dynamic_rotate %137 by %c1_i32_44 dim 0 : vector<16x16xf32>, i32 -> vector<16x16xf32>
    %140 = arith.subf %138, %139 : vector<16x16xf32>
    %141 = vector.shape_cast %140 : vector<16x16xf32> to vector<1x16x16xf32>
    %142 = vector.shape_cast %38 : vector<16x16xf32> to vector<1x16x16xf32>
    %143 = arith.mulf %141, %142 : vector<1x16x16xf32>
    %144 = arith.addf %134, %143 : vector<1x16x16xf32>
    %145 = vector.shape_cast %64 : vector<1x16x16xf32> to vector<16x16xf32>
    %c15_i32_45 = arith.constant 15 : i32
    %146 = tpu.dynamic_rotate %145 by %c15_i32_45 dim 0 : vector<16x16xf32>, i32 -> vector<16x16xf32>
    %c1_i32_46 = arith.constant 1 : i32
    %147 = tpu.dynamic_rotate %145 by %c1_i32_46 dim 0 : vector<16x16xf32>, i32 -> vector<16x16xf32>
    %148 = arith.subf %146, %147 : vector<16x16xf32>
    %149 = vector.shape_cast %148 : vector<16x16xf32> to vector<1x16x16xf32>
    %150 = vector.shape_cast %38 : vector<16x16xf32> to vector<1x16x16xf32>
    %151 = arith.mulf %149, %150 : vector<1x16x16xf32>
    %152 = arith.mulf %94, %151 : vector<1x16x16xf32>
    %153 = arith.addf %144, %152 : vector<1x16x16xf32>
    %154 = arith.mulf %70, %107 : vector<1x16x16xf32>
    %155 = arith.addf %153, %154 : vector<1x16x16xf32>
    %156 = arith.mulf %155, %155 : vector<1x16x16xf32>
    %157 = vector.shape_cast %156 : vector<1x16x16xf32> to vector<1x1x16x16xf32>
    %cst_47 = arith.constant dense<0.000000e+00> : vector<1xf32>
    %158 = vector.multi_reduction <add>, %157, %cst_47 [1, 2, 3] : vector<1x1x16x16xf32> to vector<1xf32>
    %159 = vector.shape_cast %158 : vector<1xf32> to vector<1x1x1x1xf32>
    %160 = vector.extract %159[0, 0, 0, 0] : f32 from vector<1x1x1x1xf32>
    %161 = tpu.iota {dimensions = array<i32: 1>} : vector<8x128xi32>
    %162 = tpu.iota {dimensions = array<i32: 0>} : vector<8x128xi32>
    %c0_i32 = arith.constant 0 : i32
    %163 = vector.broadcast %c0_i32 : i32 to vector<8x128xi32>
    %164 = arith.cmpi eq, %162, %163 : vector<8x128xi32>
    %c0_i32_48 = arith.constant 0 : i32
    %165 = vector.broadcast %c0_i32_48 : i32 to vector<8x128xi32>
    %166 = arith.cmpi eq, %161, %165 : vector<8x128xi32>
    %167 = arith.andi %164, %166 : vector<8x128xi1>
    %cst_49 = arith.constant 0.000000e+00 : f32
    %168 = vector.broadcast %8 : f32 to vector<8x128xf32>
    %169 = vector.broadcast %cst_49 : f32 to vector<8x128xf32>
    %170 = arith.select %167, %168, %169 : vector<8x128xi1>, vector<8x128xf32>
    %c1_i32_50 = arith.constant 1 : i32
    %171 = vector.broadcast %c1_i32_50 : i32 to vector<8x128xi32>
    %172 = arith.cmpi eq, %161, %171 : vector<8x128xi32>
    %173 = arith.andi %164, %172 : vector<8x128xi1>
    %cst_51 = arith.constant 0.000000e+00 : f32
    %174 = vector.broadcast %62 : f32 to vector<8x128xf32>
    %175 = vector.broadcast %cst_51 : f32 to vector<8x128xf32>
    %176 = arith.select %173, %174, %175 : vector<8x128xi1>, vector<8x128xf32>
    %177 = arith.addf %170, %176 : vector<8x128xf32>
    %c2_i32 = arith.constant 2 : i32
    %178 = vector.broadcast %c2_i32 : i32 to vector<8x128xi32>
    %179 = arith.cmpi eq, %161, %178 : vector<8x128xi32>
    %180 = arith.andi %164, %179 : vector<8x128xi1>
    %cst_52 = arith.constant 0.000000e+00 : f32
    %181 = vector.broadcast %133 : f32 to vector<8x128xf32>
    %182 = vector.broadcast %cst_52 : f32 to vector<8x128xf32>
    %183 = arith.select %180, %181, %182 : vector<8x128xi1>, vector<8x128xf32>
    %184 = arith.addf %177, %183 : vector<8x128xf32>
    %c3_i32 = arith.constant 3 : i32
    %185 = vector.broadcast %c3_i32 : i32 to vector<8x128xi32>
    %186 = arith.cmpi eq, %161, %185 : vector<8x128xi32>
    %187 = arith.andi %164, %186 : vector<8x128xi1>
    %cst_53 = arith.constant 0.000000e+00 : f32
    %188 = vector.broadcast %160 : f32 to vector<8x128xf32>
    %189 = vector.broadcast %cst_53 : f32 to vector<8x128xf32>
    %190 = arith.select %187, %188, %189 : vector<8x128xi1>, vector<8x128xf32>
    %191 = arith.addf %184, %190 : vector<8x128xf32>
    %c0_54 = arith.constant 0 : index
    %c0_55 = arith.constant 0 : index
    %c0_56 = arith.constant 0 : index
    %192 = vector.load %arg5[%c0_54, %c0_55, %c0_56] : memref<1x8x128xf32, #tpu.memory_space<vmem>>, vector<1x8x128xf32>
    %193 = vector.shape_cast %192 : vector<1x8x128xf32> to vector<8x128xf32>
    %194 = vector.shape_cast %191 : vector<8x128xf32> to vector<1x8x128xf32>
    tpu.vector_store %arg5[%c0_54, %c0_55, %c0_56], %194 {strides = array<i32>} : memref<1x8x128xf32, #tpu.memory_space<vmem>>, vector<1x8x128xf32>,
    return
  }
  func.func @transform_0(%arg0: i32) -> (i32, i32, i32, i32) {
    %c0_i32 = arith.constant 0 : i32
    %c0_i32_0 = arith.constant 0 : i32
    %c0_i32_1 = arith.constant 0 : i32
    %c0_i32_2 = arith.constant 0 : i32
    return %arg0, %c0_i32, %c0_i32_0, %c0_i32_1 : i32, i32, i32, i32
  }
  func.func @transform_1(%arg0: i32) -> (i32, i32, i32, i32) {
    %c0_i32 = arith.constant 0 : i32
    %c0_i32_0 = arith.constant 0 : i32
    %c0_i32_1 = arith.constant 0 : i32
    %c0_i32_2 = arith.constant 0 : i32
    return %arg0, %c0_i32, %c0_i32_0, %c0_i32_1 : i32, i32, i32, i32
  }
  func.func @transform_2(%arg0: i32) -> (i32, i32, i32, i32) {
    %c0_i32 = arith.constant 0 : i32
    %c0_i32_0 = arith.constant 0 : i32
    %c0_i32_1 = arith.constant 0 : i32
    %c0_i32_2 = arith.constant 0 : i32
    return %arg0, %c0_i32, %c0_i32_0, %c0_i32_1 : i32, i32, i32, i32
  }
  func.func @transform_3(%arg0: i32) -> (i32, i32, i32, i32) {
    %c0_i32 = arith.constant 0 : i32
    %c0_i32_0 = arith.constant 0 : i32
    %c0_i32_1 = arith.constant 0 : i32
    %c0_i32_2 = arith.constant 0 : i32
    return %arg0, %c0_i32, %c0_i32_0, %c0_i32_1 : i32, i32, i32, i32
  }
  func.func @transform_4(%arg0: i32) -> (i32, i32, i32) {
    %c0_i32 = arith.constant 0 : i32
    %c0_i32_0 = arith.constant 0 : i32
    %c0_i32_1 = arith.constant 0 : i32
    return %arg0, %c0_i32, %c0_i32_0 : i32, i32, i32
  }
}

</mosaic_0001>

<llo_original>
// kernel: tpu_custom_call.1
$region0: #{tpu_custom_call.1}
  #allocation0 [shape = 'u32[]', space=smem, size = 0x4, offset = 0x4, fixed_abs, tag = 'smem constant byte address 0x4 - core index']
  #allocation1 [shape = 'u32[72,128]{1,0:T(1,128)}', space=vmem, size = 0x9000, scoped, tag = 'internal scratch']
  %s0 = inlined_call_operand.hbm [shape: f32[2,3,16,16], index: 0, kind: input, shape index: {}]
  %s1 = inlined_call_operand.hbm [shape: f32[2,3,16,16], index: 1, kind: input, shape index: {}]
  %s2 = inlined_call_operand.hbm [shape: f32[2,3,16,16], index: 2, kind: input, shape index: {}]
  %s3 = inlined_call_operand.hbm [shape: f32[2,1,16,16], index: 3, kind: input, shape index: {}]
  %s4 = inlined_call_operand.hbm [shape: f32[2,8,128], index: 4, kind: output, shape index: {}]
  %s5 = sld [smem:[#allocation0]]
  $region65: #{tpu_custom_call.1} parent=0
    _
  %s7 = ssub.s32 1, %s5
  %s8 = scalar_select 0, %s7, %s5
  $region1: #{tpu_custom_call.1} parent=0
    #allocation2 [shape = 'u8[49152]{0}', space=vmem, size = 0xc000, scoped, tag = 'input window, operand 0']
    #allocation3 [shape = 's32[2]{0}', space=sflag, size = 0x8, scoped, tag = 'scoped memory for tpu_custom_call.1']
    #allocation4 [shape = 's32[2]{0}', space=sflag, size = 0x8, scoped, tag = 'scoped memory for tpu_custom_call.1']
    #allocation5 [shape = 'u8[49152]{0}', space=vmem, size = 0xc000, scoped, tag = 'input window, operand 1']
    #allocation6 [shape = 's32[2]{0}', space=sflag, size = 0x8, scoped, tag = 'scoped memory for tpu_custom_call.1']
    #allocation7 [shape = 'u8[49152]{0}', space=vmem, size = 0xc000, scoped, tag = 'input window, operand 2']
    #allocation8 [shape = 'u8[16384]{0}', space=vmem, size = 0x4000, scoped, tag = 'input window, operand 3']
    #allocation9 [shape = 's32[2]{0}', space=sflag, size = 0x8, scoped, tag = 'scoped memory for tpu_custom_call.1']
    #allocation10 [shape = 'u8[8192]{0}', space=vmem, size = 0x2000, scoped, tag = 'output window, operand 0']
    %9 = vsyncpa [#allocation3], 0
    %s10 = scalar_lea.sflag [#allocation3], 1
    %11 = vsyncpa %s10, 0
    %12 = vsyncpa [#allocation6], 0
    %s13 = scalar_lea.sflag [#allocation6], 1
    %14 = vsyncpa %s13, 0
    %15 = vsyncpa [#allocation9], 0
    %s16 = scalar_lea.sflag [#allocation9], 1
    %17 = vsyncpa %s16, 0
    %18 = vsyncpa [#allocation4], 0
    %s19 = scalar_lea.sflag [#allocation4], 1
    %20 = vsyncpa %s19, 0
    loop: start=0, step=1, limit=4
    $region2: #{tpu_custom_call.1} parent=1 // loop_pre_header
      _
    $region3: #{tpu_custom_call.1} parent=1 // loop_header
      %s22 = sphi 0, %s26
      %p23 = scmp.ge.s32.totalorder %s22, 4
      %s32 = sphi 0, %s34
      %s35 = sphi 0, %s32
      %s36 = sphi 0, %s35
      %s52 = sphi 0, %s36
      %s58 = sphi 0, %s60
      %s61 = sphi 0, %s58
      %s62 = sphi 0, %s61
      %s78 = sphi 0, %s62
      %s84 = sphi 0, %s86
      %s87 = sphi 0, %s84
      %s88 = sphi 0, %s87
      %s104 = sphi 0, %s88
      %s110 = sphi 0, %s112
      %s113 = sphi 0, %s110
      %s114 = sphi 0, %s113
      %s130 = sphi 0, %s114
      %s136 = sphi 0, %s138
      %s139 = sphi 0, %s136
      %s140 = sphi 0, %s139
      %s156 = sphi 0, %s140
    $region4: #{tpu_custom_call.1} parent=1 // loop_header_branch
      %25 = sbr.rel (%p23) target = $region8
    $region5: #{tpu_custom_call.1} parent=1 // loop_body
      %s27 = ssub.s32 %s22, 1
      %s28 = ssub.s32 %s22, 2
      %s29 = sadd.s32 %s22, 1
      %s30 = ssub.s32 %s22, %s29
      %p31 = scmp.eq.s32.totalorder %s30, 0
      %s33 = sadd.s32 %s32, 1
      %s34 = scalar_select %p31, %s32, %s33
      %p37 = pneg %p31
      %p38 = scmp.eq.s32.totalorder %s22, 1
      %p39 = por %p37, %p38
      %p40 = scmp.ne.s32.totalorder %s32, %s35
      %p41 = scmp.eq.s32.totalorder %s22, 0
      %p42 = por %p40, %p41
      %p43 = scmp.ne.s32.totalorder %s32, %s35
      %p44 = scmp.eq.s32.totalorder %s27, 1
      %p45 = por %p43, %p44
      %p46 = scmp.ne.s32.totalorder %s35, %s36
      %p47 = scmp.eq.s32.totalorder %s27, 0
      %p48 = por %p46, %p47
      %p49 = scmp.ne.s32.totalorder %s35, %s36
      %p50 = scmp.eq.s32.totalorder %s28, 1
      %p51 = por %p49, %p50
      %p53 = scmp.ne.s32.totalorder %s36, %s52
      %p54 = scmp.eq.s32.totalorder %s28, 0
      %p55 = por %p53, %p54
      %s56 = ssub.s32 %s22, %s29
      %p57 = scmp.eq.s32.totalorder %s56, 0
      %s59 = sadd.s32 %s58, 1
      %s60 = scalar_select %p57, %s58, %s59
      %p63 = pneg %p57
      %p64 = scmp.eq.s32.totalorder %s22, 1
      %p65 = por %p63, %p64
      %p66 = scmp.ne.s32.totalorder %s58, %s61
      %p67 = scmp.eq.s32.totalorder %s22, 0
      %p68 = por %p66, %p67
      %p69 = scmp.ne.s32.totalorder %s58, %s61
      %p70 = scmp.eq.s32.totalorder %s27, 1
      %p71 = por %p69, %p70
      %p72 = scmp.ne.s32.totalorder %s61, %s62
      %p73 = scmp.eq.s32.totalorder %s27, 0
      %p74 = por %p72, %p73
      %p75 = scmp.ne.s32.totalorder %s61, %s62
      %p76 = scmp.eq.s32.totalorder %s28, 1
      %p77 = por %p75, %p76
      %p79 = scmp.ne.s32.totalorder %s62, %s78
      %p80 = scmp.eq.s32.totalorder %s28, 0
      %p81 = por %p79, %p80
      %s82 = ssub.s32 %s22, %s29
      %p83 = scmp.eq.s32.totalorder %s82, 0
      %s85 = sadd.s32 %s84, 1
      %s86 = scalar_select %p83, %s84, %s85
      %p89 = pneg %p83
      %p90 = scmp.eq.s32.totalorder %s22, 1
      %p91 = por %p89, %p90
      %p92 = scmp.ne.s32.totalorder %s84, %s87
      %p93 = scmp.eq.s32.totalorder %s22, 0
      %p94 = por %p92, %p93
      %p95 = scmp.ne.s32.totalorder %s84, %s87
      %p96 = scmp.eq.s32.totalorder %s27, 1
      %p97 = por %p95, %p96
      %p98 = scmp.ne.s32.totalorder %s87, %s88
      %p99 = scmp.eq.s32.totalorder %s27, 0
      %p100 = por %p98, %p99
      %p101 = scmp.ne.s32.totalorder %s87, %s88
      %p102 = scmp.eq.s32.totalorder %s28, 1
      %p103 = por %p101, %p102
      %p105 = scmp.ne.s32.totalorder %s88, %s104
      %p106 = scmp.eq.s32.totalorder %s28, 0
      %p107 = por %p105, %p106
      %s108 = ssub.s32 %s22, %s29
      %p109 = scmp.eq.s32.totalorder %s108, 0
      %s111 = sadd.s32 %s110, 1
      %s112 = scalar_select %p109, %s110, %s111
      %p115 = pneg %p109
      %p116 = scmp.eq.s32.totalorder %s22, 1
      %p117 = por %p115, %p116
      %p118 = scmp.ne.s32.totalorder %s110, %s113
      %p119 = scmp.eq.s32.totalorder %s22, 0
      %p120 = por %p118, %p119
      %p121 = scmp.ne.s32.totalorder %s110, %s113
      %p122 = scmp.eq.s32.totalorder %s27, 1
      %p123 = por %p121, %p122
      %p124 = scmp.ne.s32.totalorder %s113, %s114
      %p125 = scmp.eq.s32.totalorder %s27, 0
      %p126 = por %p124, %p125
      %p127 = scmp.ne.s32.totalorder %s113, %s114
      %p128 = scmp.eq.s32.totalorder %s28, 1
      %p129 = por %p127, %p128
      %p131 = scmp.ne.s32.totalorder %s114, %s130
      %p132 = scmp.eq.s32.totalorder %s28, 0
      %p133 = por %p131, %p132
      %s134 = ssub.s32 %s22, %s29
      %p135 = scmp.eq.s32.totalorder %s134, 0
      %s137 = sadd.s32 %s136, 1
      %s138 = scalar_select %p135, %s136, %s137
      %p141 = pneg %p135
      %p142 = scmp.eq.s32.totalorder %s22, 1
      %p143 = por %p141, %p142
      %p144 = scmp.ne.s32.totalorder %s136, %s139
      %p145 = scmp.eq.s32.totalorder %s22, 0
      %p146 = por %p144, %p145
      %p147 = scmp.ne.s32.totalorder %s136, %s139
      %p148 = scmp.eq.s32.totalorder %s27, 1
      %p149 = por %p147, %p148
      %p150 = scmp.ne.s32.totalorder %s139, %s140
      %p151 = scmp.eq.s32.totalorder %s27, 0
      %p152 = por %p150, %p151
      %p153 = scmp.ne.s32.totalorder %s139, %s140
      %p154 = scmp.eq.s32.totalorder %s28, 1
      %p155 = por %p153, %p154
      %p157 = scmp.ne.s32.totalorder %s140, %s156
      %p158 = scmp.eq.s32.totalorder %s28, 0
      %p159 = por %p157, %p158
      %p160 = scmp.le.s32.totalorder 1, %s22
      %p161 = scmp.lt.s32.totalorder %s22, 3
      %p162 = pnand %p160, %p161
      %p163 = pneg %p162
      // Predicated region
      $region9: #{tpu_custom_call.1} parent=5 // pred_check
        _
      $region10: #{tpu_custom_call.1} parent=5 // pred_check_branch
        %165 = sbr.rel (%p162) target = $region12
      $region11: #{tpu_custom_call.1} parent=5 // pred_region
        %s166 = ssub.s32 %s22, 1
      $region12: #{tpu_custom_call.1} parent=5 // pred_fallthru
        _
      %p167 = scmp.lt.s32.totalorder %s22, 2
      // Predicated region
      $region13: #{tpu_custom_call.1} parent=5 // pred_check
        %p168 = pneg %p167
      $region14: #{tpu_custom_call.1} parent=5 // pred_check_branch
        %170 = sbr.rel (%p168) target = $region16
      $region15: #{tpu_custom_call.1} parent=5 // pred_region
        // Predicated region
        $region17: #{tpu_custom_call.1} parent=15 // pred_check
          %p171 = pneg %p42
        $region18: #{tpu_custom_call.1} parent=15 // pred_check_branch
          %173 = sbr.rel (%p171) target = $region20
        $region19: #{tpu_custom_call.1} parent=15 // pred_region
          %s174 = sand.u32 %s32, 1
          %s175 = scalar_lea.sflag [#allocation3], %s174
          %s176 = sand.u32 %s32, 1
          %s177 = smul.addr %s176, 48
          %s178 = scalar_lea.vmem [#allocation2], %s177
          %180 = vsyncadd %s175, 0
          %s181 = smul.addr %s22, 6
          %s182 = smul.addr %s181, 8
          %s183 = scalar_lea.hbm %s0, %s182
          %s184 = sshll.u32 %s183, 4
          %s185 = int_to_ptr.hbm [resolvable:$true] %s184
          %s186 = sshll.u32 %s178, 4
          %s187 = int_to_ptr.vmem [resolvable:$true] %s186
          %192 = dma.hbm_to_vmem [thread:$0]  %s185, 768, %s187, %s175, 128, 128, 8
        $region20: #{tpu_custom_call.1} parent=15 // pred_fallthru
          _
        // Predicated region
        $region21: #{tpu_custom_call.1} parent=15 // pred_check
          %p193 = pneg %p68
        $region22: #{tpu_custom_call.1} parent=15 // pred_check_branch
          %195 = sbr.rel (%p193) target = $region24
        $region23: #{tpu_custom_call.1} parent=15 // pred_region
          %s196 = sand.u32 %s22, 1
          %s197 = scalar_lea.sflag [#allocation6], %s196
          %s198 = sand.u32 %s58, 1
          %s199 = smul.addr %s198, 48
          %s200 = scalar_lea.vmem [#allocation5], %s199
          %202 = vsyncadd %s197, 0
          %s203 = smul.addr %s22, 6
          %s204 = smul.addr %s203, 8
          %s205 = scalar_lea.hbm %s1, %s204
          %s206 = sshll.u32 %s205, 4
          %s207 = int_to_ptr.hbm [resolvable:$true] %s206
          %s208 = sshll.u32 %s200, 4
          %s209 = int_to_ptr.vmem [resolvable:$true] %s208
          %214 = dma.hbm_to_vmem [thread:$0]  %s207, 768, %s209, %s197, 128, 128, 8
        $region24: #{tpu_custom_call.1} parent=15 // pred_fallthru
          _
        // Predicated region
        $region25: #{tpu_custom_call.1} parent=15 // pred_check
          %p215 = pneg %p94
        $region26: #{tpu_custom_call.1} parent=15 // pred_check_branch
          %217 = sbr.rel (%p215) target = $region28
        $region27: #{tpu_custom_call.1} parent=15 // pred_region
          %s218 = sand.u32 %s22, 1
          %s219 = scalar_lea.sflag [#allocation6], %s218
          %s220 = sand.u32 %s84, 1
          %s221 = smul.addr %s220, 48
          %s222 = scalar_lea.vmem [#allocation7], %s221
          %224 = vsyncadd %s219, 0
          %s225 = smul.addr %s22, 6
          %s226 = smul.addr %s225, 8
          %s227 = scalar_lea.hbm %s2, %s226
          %s228 = sshll.u32 %s227, 4
          %s229 = int_to_ptr.hbm [resolvable:$true] %s228
          %s230 = sshll.u32 %s222, 4
          %s231 = int_to_ptr.vmem [resolvable:$true] %s230
          %236 = dma.hbm_to_vmem [thread:$0]  %s229, 768, %s231, %s219, 128, 128, 8
        $region28: #{tpu_custom_call.1} parent=15 // pred_fallthru
          _
        // Predicated region
        $region29: #{tpu_custom_call.1} parent=15 // pred_check
          %p237 = pneg %p120
        $region30: #{tpu_custom_call.1} parent=15 // pred_check_branch
          %239 = sbr.rel (%p237) target = $region32
        $region31: #{tpu_custom_call.1} parent=15 // pred_region
          %s240 = sand.u32 %s110, 1
          %s241 = scalar_lea.sflag [#allocation9], %s240
          %s242 = sand.u32 %s110, 1
          %s243 = smul.addr %s242, 16
          %s244 = scalar_lea.vmem [#allocation8], %s243
          %246 = vsyncadd %s241, 0
          %s247 = smul.addr %s22, 2
          %s248 = smul.addr %s247, 8
          %s249 = scalar_lea.hbm %s3, %s248
          %s250 = sshll.u32 %s249, 4
          %s251 = int_to_ptr.hbm [resolvable:$true] %s250
          %s252 = sshll.u32 %s244, 4
          %s253 = int_to_ptr.vmem [resolvable:$true] %s252
          %258 = dma.hbm_to_vmem [thread:$0]  %s251, 256, %s253, %s241, 128, 128, 8
        $region32: #{tpu_custom_call.1} parent=15 // pred_fallthru
          _
      $region16: #{tpu_custom_call.1} parent=5 // pred_fallthru
        _
      %p259 = scmp.le.s32.totalorder 1, %s22
      %p260 = scmp.lt.s32.totalorder %s22, 3
      %p261 = pnand %p259, %p260
      %p262 = pneg %p261
      // Predicated region
      $region33: #{tpu_custom_call.1} parent=5 // pred_check
        _
      $region34: #{tpu_custom_call.1} parent=5 // pred_check_branch
        %264 = sbr.rel (%p261) target = $region36
      $region35: #{tpu_custom_call.1} parent=5 // pred_region
        %s265 = ssub.s32 %s22, 1
        %s266 = sand.u32 %s35, 1
        %s267 = scalar_lea.sflag [#allocation3], %s266
        %s268 = sand.u32 %s35, 1
        %s269 = smul.addr %s268, 48
        %s270 = scalar_lea.vmem [#allocation2], %s269
        // Predicated region
        $region37: #{tpu_custom_call.1} parent=35 // pred_check
          %p271 = pneg %p48
        $region38: #{tpu_custom_call.1} parent=35 // pred_check_branch
          %273 = sbr.rel (%p271) target = $region40
        $region39: #{tpu_custom_call.1} parent=35 // pred_region
          %275 = dma.done %s267, 768
        $region40: #{tpu_custom_call.1} parent=35 // pred_fallthru
          _
        %s276 = sand.u32 %s27, 1
        %s277 = scalar_lea.sflag [#allocation6], %s276
        %s278 = sand.u32 %s61, 1
        %s279 = smul.addr %s278, 48
        %s280 = scalar_lea.vmem [#allocation5], %s279
        // Predicated region
        $region41: #{tpu_custom_call.1} parent=35 // pred_check
          %p281 = pneg %p74
        $region42: #{tpu_custom_call.1} parent=35 // pred_check_branch
          %283 = sbr.rel (%p281) target = $region44
        $region43: #{tpu_custom_call.1} parent=35 // pred_region
          %285 = dma.done %s277, 768
        $region44: #{tpu_custom_call.1} parent=35 // pred_fallthru
          _
        %s286 = sand.u32 %s27, 1
        %s287 = scalar_lea.sflag [#allocation6], %s286
        %s288 = sand.u32 %s87, 1
        %s289 = smul.addr %s288, 48
        %s290 = scalar_lea.vmem [#allocation7], %s289
        // Predicated region
        $region45: #{tpu_custom_call.1} parent=35 // pred_check
          %p291 = pneg %p100
        $region46: #{tpu_custom_call.1} parent=35 // pred_check_branch
          %293 = sbr.rel (%p291) target = $region48
        $region47: #{tpu_custom_call.1} parent=35 // pred_region
          %295 = dma.done %s287, 768
        $region48: #{tpu_custom_call.1} parent=35 // pred_fallthru
          _
        %s296 = sand.u32 %s113, 1
        %s297 = scalar_lea.sflag [#allocation9], %s296
        %s298 = sand.u32 %s113, 1
        %s299 = smul.addr %s298, 16
        %s300 = scalar_lea.vmem [#allocation8], %s299
        // Predicated region
        $region49: #{tpu_custom_call.1} parent=35 // pred_check
          %p301 = pneg %p126
        $region50: #{tpu_custom_call.1} parent=35 // pred_check_branch
          %303 = sbr.rel (%p301) target = $region52
        $region51: #{tpu_custom_call.1} parent=35 // pred_region
          %305 = dma.done %s297, 256
        $region52: #{tpu_custom_call.1} parent=35 // pred_fallthru
          _
        %s306 = sand.u32 %s35, 1
        %s307 = scalar_lea.sflag [#allocation3], %s306
        %s308 = sand.u32 %s35, 1
        %s309 = smul.addr %s308, 48
        %s310 = scalar_lea.vmem [#allocation2], %s309
        %p311 = pneg %p48
        %p312 = pneg %p45
        %s313 = sand.u32 %s27, 1
        %s314 = scalar_lea.sflag [#allocation6], %s313
        %s315 = sand.u32 %s61, 1
        %s316 = smul.addr %s315, 48
        %s317 = scalar_lea.vmem [#allocation5], %s316
        %p318 = pneg %p74
        %p319 = pneg %p71
        %s320 = sand.u32 %s27, 1
        %s321 = scalar_lea.sflag [#allocation6], %s320
        %s322 = sand.u32 %s87, 1
        %s323 = smul.addr %s322, 48
        %s324 = scalar_lea.vmem [#allocation7], %s323
        %p325 = pneg %p100
        %p326 = pneg %p97
        %s327 = sand.u32 %s113, 1
        %s328 = scalar_lea.sflag [#allocation9], %s327
        %s329 = sand.u32 %s113, 1
        %s330 = smul.addr %s329, 16
        %s331 = scalar_lea.vmem [#allocation8], %s330
        %p332 = pneg %p126
        %p333 = pneg %p123
        %p334 = pneg %p152
        %p335 = pneg %p149
        %s336 = sand.u32 %s139, 1
        %s337 = scalar_lea.sflag [#allocation4], %s336
        %s338 = sand.u32 %s139, 1
        %s339 = smul.addr %s338, 8
        %s340 = scalar_lea.vmem [#allocation10], %s339
        %v341 = vld [vmem:[%s270] sm:$0xff]
        %v342 = vld [vmem:[%s270 + $0x8] sm:$0xff]
        %v343 = vld [vmem:[%s270 + $0x10] sm:$0xff]
        %v344 = vld [vmem:[%s270 + $0x18] sm:$0xff]
        %v345 = vld [vmem:[%s270 + $0x20] sm:$0xff]
        %v346 = vld [vmem:[%s270 + $0x28] sm:$0xff]
        %v347 = vld [vmem:[%s290] sm:$0xff]
        %v348 = vld [vmem:[%s290 + $0x8] sm:$0xff]
        %v349 = vld [vmem:[%s290 + $0x10] sm:$0xff]
        %v350 = vld [vmem:[%s290 + $0x18] sm:$0xff]
        %v351 = vld [vmem:[%s290 + $0x20] sm:$0xff]
        %v352 = vld [vmem:[%s290 + $0x28] sm:$0xff]
        %v353 = vld [vmem:[%s280] sm:$0xff]
        %v354 = vld [vmem:[%s280 + $0x8] sm:$0xff]
        %v355 = vld [vmem:[%s280 + $0x10] sm:$0xff]
        %v356 = vld [vmem:[%s280 + $0x18] sm:$0xff]
        %v357 = vld [vmem:[%s280 + $0x20] sm:$0xff]
        %v358 = vld [vmem:[%s280 + $0x28] sm:$0xff]
        %v359 = vsub.f32 %v341, %v347
        %v360 = vsub.f32 %v342, %v348
        %v361 = vsub.f32 %v343, %v349
        %v362 = vsub.f32 %v344, %v350
        %v363 = vsub.f32 %v345, %v351
        %v364 = vsub.f32 %v346, %v352
        %v365 = vmul.f32 %v359, %v359
        %v366 = vmul.f32 %v360, %v360
        %v367 = vmul.f32 %v361, %v361
        %v368 = vmul.f32 %v362, %v362
        %v369 = vmul.f32 %v363, %v363
        %v370 = vmul.f32 %v364, %v364
        %vm371 = vcmask 130048
        %v372 = vsel %vm371, %v365, 0.0
        %v373 = vsel %vm371, %v366, 0.0
        %v374 = vadd.f32 %v372, %v373
        %v375 = vsel %vm371, %v367, 0.0
        %v376 = vadd.f32 %v374, %v375
        %v377 = vsel %vm371, %v368, 0.0
        %v378 = vadd.f32 %v376, %v377
        %v379 = vsel %vm371, %v369, 0.0
        %v380 = vadd.f32 %v378, %v379
        %v381 = vsel %vm371, %v370, 0.0
        %v382 = vadd.f32 %v380, %v381
        %383 = vadd.xlane.f32.xlu0 %v382
        %v384 = vpop.xlane.xlu0 %383
        %v385 = vrot.slane %v384, 4
        %v386 = vadd.f32 %v384, %v385
        %v387 = vrot.slane %v386, 2
        %v388 = vadd.f32 %v386, %v387
        %v389 = vrot.slane %v388, 1
        %v390 = vadd.f32 %v388, %v389
        %s391 = vtos %v390
        %v392 = vlaneseq
        %v393 = vand.u32 %v392, 127
        %v394 = vlaneseq
        %v395 = vshrl.u32 %v394, 7
        %v396 = vadd.s32 %v395, 8
        %vm397 = vcmp.ge.s32.totalorder %v393, 1
        %vm398 = vcmp.le.s32.totalorder %v393, 14
        %vm399 = vmand %vm397, %vm398
        %v400 = vsel %vm399, 0.5, 0.0
        %vm401 = vcmp.ge.s32.totalorder %v395, 1
        %vm402 = vcmp.ge.s32.totalorder %v396, 1
        %vm403 = vcmp.le.s32.totalorder %v395, 14
        %vm404 = vcmp.le.s32.totalorder %v396, 14
        %vm405 = vmand %vm401, %vm403
        %vm406 = vmand %vm402, %vm404
        %v407 = vsel %vm405, 0.5, 0.0
        %v408 = vsel %vm406, 0.5, 0.0
        %v409 = vsub.f32 %v341, %v353
        %v410 = vsub.f32 %v342, %v354
        %v411 = vmul.f32 %v409, 10.0
        %v412 = vmul.f32 %v410, 10.0
        %vm413 = vcmask 1047680
        %414 = vrot.lane.b32.xlu0 %v343, 16
        %v415 = vpop.permute.xlu0 %414
        %v416 = vsel %vm413, %v415, %v343
        %417 = vrot.lane.b32.xlu0 %v344, 16
        %v418 = vpop.permute.xlu0 %417
        %v419 = vsel %vm413, %v418, %v344
        %420 = vrot.lane.b32.xlu0 %v416, 16
        %v421 = vpop.permute.xlu0 %420
        %422 = vrot.lane.b32.xlu0 %v419, 16
        %v423 = vpop.permute.xlu0 %422
        %v424 = vsel %vm413, %v421, %v343
        %v425 = vsel %vm413, %v423, %v344
        %428 = vrot.lane.b32.xlu0 %v424, 114
        %v429 = vpop.permute.xlu0 %428
        %430 = vrot.lane.b32.xlu0 %v425, 114
        %v431 = vpop.permute.xlu0 %430
        %v434 = vsub.f32 %v424, %v429
        %v435 = vsub.f32 %v425, %v431
        %437 = vrot.lane.b32.xlu0 %v400, 1
        %v438 = vpop.permute.xlu0 %437
        %v440 = vmul.f32 %v434, %v438
        %v441 = vmul.f32 %v435, %v438
        %444 = vrot.lane.b32.xlu0 %v440, 127
        %v445 = vpop.permute.xlu0 %444
        %446 = vrot.lane.b32.xlu0 %v441, 127
        %v447 = vpop.permute.xlu0 %446
        %v450 = vadd.f32 %v411, %v445
        %v451 = vadd.f32 %v412, %v447
        %v452 = vrot.slane %v345, 1
        %v453 = vrot.slane %v346, 1
        %vm454 = vcmp.lt.s32.totalorder %v395, 7
        %v455 = vsel %vm454, %v452, %v453
        %v456 = vsel %vm454, %v453, %v452
        %v457 = vrot.slane %v345, 7
        %v458 = vrot.slane %v346, 7
        %vm459 = vcmp.lt.s32.totalorder %v395, 1
        %v460 = vsel %vm459, %v457, %v458
        %v461 = vsel %vm459, %v458, %v457
        %v462 = vsub.f32 %v455, %v461
        %v463 = vsub.f32 %v456, %v460
        %v464 = vmul.f32 %v462, %v407
        %v465 = vmul.f32 %v463, %v408
        %v466 = vadd.f32 %v450, %v464
        %v467 = vadd.f32 %v451, %v465
        %v468 = vmul.f32 %v466, %v466
        %v469 = vmul.f32 %v467, %v467
        %v470 = vsel %vm371, %v468, 0.0
        %v471 = vsel %vm371, %v469, 0.0
        %v472 = vadd.f32 %v470, %v471
        %473 = vadd.xlane.f32.xlu0 %v472
        %v474 = vpop.xlane.xlu0 %473
        %v475 = vrot.slane %v474, 4
        %v476 = vadd.f32 %v474, %v475
        %v477 = vrot.slane %v476, 2
        %v478 = vadd.f32 %v476, %v477
        %v479 = vrot.slane %v478, 1
        %v480 = vadd.f32 %v478, %v479
        %s481 = vtos %v480
        %v482 = vld [vmem:[%s300] sm:$0xff]
        %v483 = vld [vmem:[%s300 + $0x8] sm:$0xff]
        %v484 = vadd.f32 %v341, 1e-06
        %v485 = vadd.f32 %v342, 1e-06
        %v486 = vrcp.pop %v484
        %v487 = vmul.f32 %v484, %v486
        %v488 = vsub.f32 1.0, %v487
        %v489 = vmul.f32 %v486, %v488
        %v490 = vadd.f32 %v486, %v489
        %vm491 = vweird.f32 %v484
        %vm492 = vweird.f32 %v486
        %vm493 = vmor %vm491, %vm492
        %v494 = vsel %vm493, %v486, %v490
        %v495 = vand.u32 2147483647, %v484
        %vm496 = vcmp.eq.f32.partialorder %v495, 8.507059e+37
        %v497 = vand.u32 %v484, 2147483648
        %v498 = vor.u32 1.1754944e-38, %v497
        %v499 = vsel %vm496, %v498, %v494
        %v500 = vmul.f32 1.0, %v499
        %v501 = vrcp.pop %v485
        %v502 = vmul.f32 %v485, %v501
        %v503 = vsub.f32 1.0, %v502
        %v504 = vmul.f32 %v501, %v503
        %v505 = vadd.f32 %v501, %v504
        %vm506 = vweird.f32 %v485
        %vm507 = vweird.f32 %v501
        %vm508 = vmor %vm506, %vm507
        %v509 = vsel %vm508, %v501, %v505
        %v510 = vand.u32 2147483647, %v485
        %vm511 = vcmp.eq.f32.partialorder %v510, 8.507059e+37
        %v512 = vand.u32 %v485, 2147483648
        %v513 = vor.u32 1.1754944e-38, %v512
        %v514 = vsel %vm511, %v513, %v509
        %v515 = vmul.f32 1.0, %v514
        %v516 = vmul.f32 %v343, %v500
        %v517 = vmul.f32 %v344, %v515
        %v518 = vmul.f32 %v345, %v500
        %v519 = vmul.f32 %v346, %v515
        %v520 = vsub.f32 %v343, %v355
        %v521 = vsub.f32 %v344, %v356
        %v522 = vmul.f32 %v520, 10.0
        %v523 = vmul.f32 %v521, 10.0
        %v524 = vsub.f32 %v345, %v357
        %v525 = vsub.f32 %v346, %v358
        %v526 = vmul.f32 %v524, 10.0
        %v527 = vmul.f32 %v525, 10.0
        %v528 = vmul.f32 %v341, %v516
        %v529 = vmul.f32 %v342, %v517
        %v530 = vmul.f32 %v528, %v518
        %v531 = vmul.f32 %v529, %v519
        %532 = vrot.lane.b32.xlu0 %v530, 16
        %v533 = vpop.permute.xlu0 %532
        %v534 = vsel %vm413, %v533, %v530
        %535 = vrot.lane.b32.xlu0 %v531, 16
        %v536 = vpop.permute.xlu0 %535
        %v537 = vsel %vm413, %v536, %v531
        %538 = vrot.lane.b32.xlu0 %v534, 16
        %v539 = vpop.permute.xlu0 %538
        %540 = vrot.lane.b32.xlu0 %v537, 16
        %v541 = vpop.permute.xlu0 %540
        %v542 = vsel %vm413, %v539, %v530
        %v543 = vsel %vm413, %v541, %v531
        %546 = vrot.lane.b32.xlu0 %v542, 114
        %v547 = vpop.permute.xlu0 %546
        %548 = vrot.lane.b32.xlu0 %v543, 114
        %v549 = vpop.permute.xlu0 %548
        %v552 = vsub.f32 %v542, %v547
        %v553 = vsub.f32 %v543, %v549
        %v554 = vmul.f32 %v552, %v438
        %v555 = vmul.f32 %v553, %v438
        %v556 = vrot.slane %v530, 1
        %v557 = vrot.slane %v531, 1
        %v558 = vsel %vm454, %v556, %v557
        %v559 = vsel %vm454, %v557, %v556
        %v560 = vrot.slane %v530, 7
        %v561 = vrot.slane %v531, 7
        %v562 = vsel %vm459, %v560, %v561
        %v563 = vsel %vm459, %v561, %v560
        %v564 = vsub.f32 %v558, %v563
        %v565 = vsub.f32 %v559, %v562
        %v566 = vmul.f32 %v564, %v407
        %v567 = vmul.f32 %v565, %v408
        %v568 = vmul.f32 %v341, 9.81
        %v569 = vmul.f32 %v342, 9.81
        %v570 = vmul.f32 %v516, %v516
        %v571 = vmul.f32 %v517, %v517
        %v572 = vmul.f32 %v518, %v518
        %v573 = vmul.f32 %v519, %v519
        %v574 = vadd.f32 %v570, %v572
        %v575 = vadd.f32 %v571, %v573
        %v576 = vrsqrt.pop %v574
        %v577 = vmul.f32 %v576, %v574
        %v578 = vmul.f32 %v577, %v576
        %v579 = vmul.f32 0.5, %v578
        %v580 = vsub.f32 1.5, %v579
        %v581 = vmul.f32 %v576, %v580
        %v582 = vmul.f32 %v574, %v581
        %vm583 = vcmp.eq.f32.partialorder %v574, inf
        %v584 = vsel %vm583, %v574, %v582
        %vm585 = vcmp.eq.f32.partialorder %v574, 0.0
        %v586 = vand.u32 %v574, 2147483648
        %v587 = vsel %vm585, %v586, %v584
        %v588 = vrsqrt.pop %v575
        %v589 = vmul.f32 %v588, %v575
        %v590 = vmul.f32 %v589, %v588
        %v591 = vmul.f32 0.5, %v590
        %v592 = vsub.f32 1.5, %v591
        %v593 = vmul.f32 %v588, %v592
        %v594 = vmul.f32 %v575, %v593
        %vm595 = vcmp.eq.f32.partialorder %v575, inf
        %v596 = vsel %vm595, %v575, %v594
        %vm597 = vcmp.eq.f32.partialorder %v575, 0.0
        %v598 = vand.u32 %v575, 2147483648
        %v599 = vsel %vm597, %v598, %v596
        %v600 = vmax.f32 %v341, 3.1622778e-05
        %v601 = vmax.f32 %v342, 3.1622778e-05
        %v602 = vlog2.pop %v600
        %v603 = vmul.f32 %v602, 0.6931472
        %v604 = vlog2.pop %v601
        %v605 = vmul.f32 %v604, 0.6931472
        %v606 = vmul.f32 %v603, -1.3333334
        %v607 = vmul.f32 %v605, -1.3333334
        %v608 = vmul.f32 %v606, 1.442695
        %v609 = vpow.pop %v608
        %v610 = vmul.f32 %v607, 1.442695
        %v611 = vpow.pop %v610
        %v612 = vmul.f32 %v587, 0.01201725
        %v613 = vmul.f32 %v599, 0.01201725
        %v614 = vmul.f32 %v612, %v609
        %v615 = vmul.f32 %v613, %v611
        %v616 = vmul.f32 %v528, %v516
        %v617 = vmul.f32 %v529, %v517
        %618 = vrot.lane.b32.xlu0 %v616, 16
        %v619 = vpop.permute.xlu0 %618
        %v620 = vsel %vm413, %v619, %v616
        %621 = vrot.lane.b32.xlu0 %v617, 16
        %v622 = vpop.permute.xlu0 %621
        %v623 = vsel %vm413, %v622, %v617
        %624 = vrot.lane.b32.xlu0 %v620, 16
        %v625 = vpop.permute.xlu0 %624
        %626 = vrot.lane.b32.xlu0 %v623, 16
        %v627 = vpop.permute.xlu0 %626
        %v628 = vsel %vm413, %v625, %v616
        %v629 = vsel %vm413, %v627, %v617
        %632 = vrot.lane.b32.xlu0 %v628, 114
        %v633 = vpop.permute.xlu0 %632
        %634 = vrot.lane.b32.xlu0 %v629, 114
        %v635 = vpop.permute.xlu0 %634
        %v638 = vsub.f32 %v628, %v633
        %v639 = vsub.f32 %v629, %v635
        %v640 = vmul.f32 %v638, %v438
        %v641 = vmul.f32 %v639, %v438
        %644 = vrot.lane.b32.xlu0 %v640, 127
        %v645 = vpop.permute.xlu0 %644
        %646 = vrot.lane.b32.xlu0 %v641, 127
        %v647 = vpop.permute.xlu0 %646
        %v650 = vadd.f32 %v522, %v645
        %v651 = vadd.f32 %v523, %v647
        %v652 = vadd.f32 %v650, %v566
        %v653 = vadd.f32 %v651, %v567
        %654 = vrot.lane.b32.xlu0 %v482, 16
        %v655 = vpop.permute.xlu0 %654
        %v656 = vsel %vm413, %v655, %v482
        %657 = vrot.lane.b32.xlu0 %v483, 16
        %v658 = vpop.permute.xlu0 %657
        %v659 = vsel %vm413, %v658, %v483
        %660 = vrot.lane.b32.xlu0 %v656, 16
        %v661 = vpop.permute.xlu0 %660
        %662 = vrot.lane.b32.xlu0 %v659, 16
        %v663 = vpop.permute.xlu0 %662
        %v664 = vsel %vm413, %v661, %v482
        %v665 = vsel %vm413, %v663, %v483
        %668 = vrot.lane.b32.xlu0 %v664, 114
        %v669 = vpop.permute.xlu0 %668
        %670 = vrot.lane.b32.xlu0 %v665, 114
        %v671 = vpop.permute.xlu0 %670
        %v674 = vsub.f32 %v664, %v669
        %v675 = vsub.f32 %v665, %v671
        %v676 = vmul.f32 %v674, %v438
        %v677 = vmul.f32 %v675, %v438
        %680 = vrot.lane.b32.xlu0 %v676, 127
        %v681 = vpop.permute.xlu0 %680
        %682 = vrot.lane.b32.xlu0 %v677, 127
        %v683 = vpop.permute.xlu0 %682
        %v686 = vmul.f32 %v568, %v681
        %v687 = vmul.f32 %v569, %v683
        %v688 = vadd.f32 %v652, %v686
        %v689 = vadd.f32 %v653, %v687
        %v690 = vmul.f32 %v516, %v614
        %v691 = vmul.f32 %v517, %v615
        %v692 = vadd.f32 %v688, %v690
        %v693 = vadd.f32 %v689, %v691
        %v694 = vmul.f32 %v692, %v692
        %v695 = vmul.f32 %v693, %v693
        %v696 = vsel %vm371, %v694, 0.0
        %v697 = vsel %vm371, %v695, 0.0
        %v698 = vadd.f32 %v696, %v697
        %699 = vadd.xlane.f32.xlu0 %v698
        %v700 = vpop.xlane.xlu0 %699
        %v701 = vrot.slane %v700, 4
        %v702 = vadd.f32 %v700, %v701
        %v703 = vrot.slane %v702, 2
        %v704 = vadd.f32 %v702, %v703
        %v705 = vrot.slane %v704, 1
        %v706 = vadd.f32 %v704, %v705
        %s707 = vtos %v706
        %710 = vrot.lane.b32.xlu0 %v554, 127
        %v711 = vpop.permute.xlu0 %710
        %712 = vrot.lane.b32.xlu0 %v555, 127
        %v713 = vpop.permute.xlu0 %712
        %v716 = vadd.f32 %v526, %v711
        %v717 = vadd.f32 %v527, %v713
        %v718 = vmul.f32 %v341, %v518
        %v719 = vmul.f32 %v342, %v519
        %v720 = vmul.f32 %v718, %v518
        %v721 = vmul.f32 %v719, %v519
        %v722 = vrot.slane %v720, 1
        %v723 = vrot.slane %v721, 1
        %v724 = vsel %vm454, %v722, %v723
        %v725 = vsel %vm454, %v723, %v722
        %v726 = vrot.slane %v720, 7
        %v727 = vrot.slane %v721, 7
        %v728 = vsel %vm459, %v726, %v727
        %v729 = vsel %vm459, %v727, %v726
        %v730 = vsub.f32 %v724, %v729
        %v731 = vsub.f32 %v725, %v728
        %v732 = vmul.f32 %v730, %v407
        %v733 = vmul.f32 %v731, %v408
        %v734 = vadd.f32 %v716, %v732
        %v735 = vadd.f32 %v717, %v733
        %v736 = vrot.slane %v482, 1
        %v737 = vrot.slane %v483, 1
        %v738 = vsel %vm454, %v736, %v737
        %v739 = vsel %vm454, %v737, %v736
        %v740 = vrot.slane %v482, 7
        %v741 = vrot.slane %v483, 7
        %v742 = vsel %vm459, %v740, %v741
        %v743 = vsel %vm459, %v741, %v740
        %v744 = vsub.f32 %v738, %v743
        %v745 = vsub.f32 %v739, %v742
        %v746 = vmul.f32 %v744, %v407
        %v747 = vmul.f32 %v745, %v408
        %v748 = vmul.f32 %v568, %v746
        %v749 = vmul.f32 %v569, %v747
        %v750 = vadd.f32 %v734, %v748
        %v751 = vadd.f32 %v735, %v749
        %v752 = vmul.f32 %v518, %v614
        %v753 = vmul.f32 %v519, %v615
        %v754 = vadd.f32 %v750, %v752
        %v755 = vadd.f32 %v751, %v753
        %v756 = vmul.f32 %v754, %v754
        %v757 = vmul.f32 %v755, %v755
        %v758 = vsel %vm371, %v756, 0.0
        %v759 = vsel %vm371, %v757, 0.0
        %v760 = vadd.f32 %v758, %v759
        %761 = vadd.xlane.f32.xlu0 %v760
        %v762 = vpop.xlane.xlu0 %761
        %v763 = vrot.slane %v762, 4
        %v764 = vadd.f32 %v762, %v763
        %v765 = vrot.slane %v764, 2
        %v766 = vadd.f32 %v764, %v765
        %v767 = vrot.slane %v766, 1
        %v768 = vadd.f32 %v766, %v767
        %s769 = vtos %v768
        %vm770 = vcmp.eq.s32.totalorder %v395, 0
        %vm771 = vcmp.eq.s32.totalorder %v393, 0
        %vm772 = vmand %vm770, %vm771
        %v773 = vstv %s391
        %v774 = vsel %vm772, %v773, 0.0
        %vm775 = vcmp.eq.s32.totalorder %v393, 1
        %vm776 = vmand %vm770, %vm775
        %v777 = vstv %s481
        %v778 = vsel %vm776, %v777, 0.0
        %v779 = vadd.f32 %v774, %v778
        %vm780 = vcmp.eq.s32.totalorder %v393, 2
        %vm781 = vmand %vm770, %vm780
        %v782 = vstv %s707
        %v783 = vsel %vm781, %v782, 0.0
        %v784 = vadd.f32 %v779, %v783
        %vm785 = vcmp.eq.s32.totalorder %v393, 3
        %vm786 = vmand %vm770, %vm785
        %v787 = vstv %s769
        %v788 = vsel %vm786, %v787, 0.0
        %v789 = vadd.f32 %v784, %v788
        %790 = vst [vmem:[%s340] sm:$0xff] %v789
        %s791 = sand.u32 %s139, 1
        %s792 = scalar_lea.sflag [#allocation4], %s791
        %s793 = sand.u32 %s139, 1
        %s794 = smul.addr %s793, 8
        %s795 = scalar_lea.vmem [#allocation10], %s794
        // Predicated region
        $region53: #{tpu_custom_call.1} parent=35 // pred_check
          %p796 = pneg %p149
        $region54: #{tpu_custom_call.1} parent=35 // pred_check_branch
          %798 = sbr.rel (%p796) target = $region56
        $region55: #{tpu_custom_call.1} parent=35 // pred_region
          %800 = vsyncadd %s792, 0
          %s801 = smul.addr %s27, 8
          %s802 = scalar_lea.hbm %s4, %s801
          %s804 = sshll.u32 %s795, 4
          %s805 = int_to_ptr.vmem [resolvable:$true] %s804
          %s806 = sshll.u32 %s802, 4
          %s807 = int_to_ptr.hbm [resolvable:$true] %s806
          %809 = dma.vmem_to_hbm [thread:$0]  %s805, 128, %s807, %s792
        $region56: #{tpu_custom_call.1} parent=35 // pred_fallthru
          _
      $region36: #{tpu_custom_call.1} parent=5 // pred_fallthru
        _
      %p810 = scmp.le.s32.totalorder 2, %s22
      // Predicated region
      $region57: #{tpu_custom_call.1} parent=5 // pred_check
        %p811 = pneg %p810
      $region58: #{tpu_custom_call.1} parent=5 // pred_check_branch
        %813 = sbr.rel (%p811) target = $region60
      $region59: #{tpu_custom_call.1} parent=5 // pred_region
        %s814 = ssub.s32 %s22, 2
        // Predicated region
        $region61: #{tpu_custom_call.1} parent=59 // pred_check
          %p815 = pneg %p155
        $region62: #{tpu_custom_call.1} parent=59 // pred_check_branch
          %817 = sbr.rel (%p815) target = $region64
        $region63: #{tpu_custom_call.1} parent=59 // pred_region
          %s818 = sand.u32 %s140, 1
          %s819 = scalar_lea.sflag [#allocation4], %s818
          %s820 = sand.u32 %s140, 1
          %s821 = smul.addr %s820, 8
          %s822 = scalar_lea.vmem [#allocation10], %s821
          %824 = dma.done %s819, 128
        $region64: #{tpu_custom_call.1} parent=59 // pred_fallthru
          _
      $region60: #{tpu_custom_call.1} parent=5 // pred_fallthru
        _
    $region6: #{tpu_custom_call.1} parent=1 // loop_footer
      %s26 = sadd.s32 1, %s22
    $region7: #{tpu_custom_call.1} parent=1 // loop_footer_branch
      %21 = sbr.rel target = $region3
    $region8: #{tpu_custom_call.1} parent=1 // loop_exit
      _
    %825 = vsyncpa [#allocation3], 1
    %s826 = scalar_lea.sflag [#allocation3], 1
    %827 = vsyncpa %s826, 1
    %828 = vsyncpa [#allocation6], 1
    %s829 = scalar_lea.sflag [#allocation6], 1
    %830 = vsyncpa %s829, 1
    %831 = vsyncpa [#allocation9], 1
    %s832 = scalar_lea.sflag [#allocation9], 1
    %833 = vsyncpa %s832, 1
    %834 = vsyncpa [#allocation4], 1
    %s835 = scalar_lea.sflag [#allocation4], 1
    %836 = vsyncpa %s835, 1

</llo_original>
